<compile_context>
chip_gen: v6e
topology: v6e:2x2x1
jax: 0.10.0
libtpu: 0.0.40
codegen_flags: <defaults>
</compile_context>

<pallas_src>
import functools

import jax
import jax.numpy as jnp
from jax.experimental import pallas as pl
from jax.experimental.pallas import tpu as pltpu


def _softmax_body_kernel(T, x_ref, u_ref, actions_ref):
    """Gumbel-max categorical sample per row of x along the lane (last) axis."""
    B, A = x_ref.shape

    # Scaled logits (the only arithmetic F.softmax needs under Gumbel-max).
    z = x_ref[...].astype(jnp.float32) * T

    # Gumbel noise from uniform draws: g = -log(-log(u)).  Both logs are EUP ops.
    u = jnp.maximum(u_ref[...], jnp.float32(1e-12))   # guard log(0)
    g = -jnp.log(-jnp.log(u))
    z = z + g

    # argmax along the lane axis (ties -> lowest index), built from ops that lower
    # cleanly on Mosaic: lane max reduce, 2-D iota, select, lane min reduce.
    m = jnp.max(z, axis=-1, keepdims=True)
    idx = jax.lax.broadcasted_iota(jnp.int32, (B, A), 1)
    cand = jnp.where(z == m, idx, jnp.int32(A))
    action = jnp.min(cand, axis=-1, keepdims=True).astype(jnp.int32)

    actions_ref[...] = action


def softmax_body(outputs, key, T, *, block_b=128):
    """outputs: (B, A) float32 Q-values, key: jax PRNG key, T: python float temperature.

    Returns (B, 1) int32 sampled actions ~ Categorical(softmax(outputs * T)).
    """
    B, A = outputs.shape

    # Sampling noise drawn outside the kernel (see header note); one uniform per logit.
    u = jax.random.uniform(key, (B, A), dtype=jnp.float32)

    bb = min(B, block_b)
    grid = (pl.cdiv(B, bb),)
    kernel = functools.partial(_softmax_body_kernel, float(T))

    return pl.pallas_call(
        kernel,
        out_shape=jax.ShapeDtypeStruct((B, 1), jnp.int32),
        grid=grid,
        in_specs=[
            pl.BlockSpec((bb, A), lambda i: (i, 0)),   # logits tile
            pl.BlockSpec((bb, A), lambda i: (i, 0)),   # uniform noise tile
        ],
        out_specs=pl.BlockSpec((bb, 1), lambda i: (i, 0)),
        compiler_params=pltpu.CompilerParams(
            dimension_semantics=("parallel",),          # shards over B on v7x megacore
        ),
    )(outputs, u)


if __name__ == "__main__":
    B, A = 8, 16          # batch of Q-value rows, A discrete actions
    T = 1.0               # SoftmaxBody temperature (module __init__ arg)

    root = jax.random.PRNGKey(0)
    k_logits, k_sample = jax.random.split(root)
    outputs = jax.random.normal(k_logits, (B, A), dtype=jnp.float32)

    actions = softmax_body(outputs, k_sample, T)
    actions = jax.block_until_ready(actions)

    assert actions.shape == (B, 1)
    assert actions.dtype == jnp.int32
    assert bool(jnp.all((actions >= 0) & (actions < A)))
    print("KERNEL_OK")
</pallas_src>

<mosaic_0001>
module attributes {stable_mosaic.version = 11 : i64} {
  func.func @_softmax_body_kernel(%arg0: i32, %arg1: memref<8x16xf32, #tpu.memory_space<vmem>>, %arg2: memref<8x16xf32, #tpu.memory_space<vmem>>, %arg3: memref<8x1xi32, #tpu.memory_space<vmem>>) attributes {dimension_semantics = [#tpu.dimension_semantics<parallel>], iteration_bounds = array<i64: 1>, scalar_prefetch = 0 : i64, scratch_operands = 0 : i64, tpu.core_type = #tpu.core_type<tc>, window_params = [{transform_indices = @transform_0, window_bounds = array<i64: 8, 16>}, {transform_indices = @transform_1, window_bounds = array<i64: 8, 16>}, {transform_indices = @transform_2, window_bounds = array<i64: 8, 1>}]} {
    %c0 = arith.constant 0 : index
    %c0_0 = arith.constant 0 : index
    %0 = vector.load %arg1[%c0, %c0_0] : memref<8x16xf32, #tpu.memory_space<vmem>>, vector<8x16xf32>
    %cst = arith.constant 1.000000e+00 : f32
    %1 = vector.broadcast %cst : f32 to vector<8x16xf32>
    %2 = arith.mulf %0, %1 : vector<8x16xf32>
    %c0_1 = arith.constant 0 : index
    %c0_2 = arith.constant 0 : index
    %3 = vector.load %arg2[%c0_1, %c0_2] : memref<8x16xf32, #tpu.memory_space<vmem>>, vector<8x16xf32>
    %cst_3 = arith.constant 9.99999996E-13 : f32
    %4 = vector.broadcast %cst_3 : f32 to vector<8x16xf32>
    %5 = arith.maximumf %3, %4 : vector<8x16xf32>
    %6 = math.log %5 : vector<8x16xf32>
    %cst_4 = arith.constant 0.000000e+00 : f32
    %7 = vector.broadcast %cst_4 : f32 to vector<8x16xf32>
    %8 = arith.subf %7, %6 : vector<8x16xf32>
    %9 = math.log %8 : vector<8x16xf32>
    %cst_5 = arith.constant 0.000000e+00 : f32
    %10 = vector.broadcast %cst_5 : f32 to vector<8x16xf32>
    %11 = arith.subf %10, %9 : vector<8x16xf32>
    %12 = arith.addf %2, %11 : vector<8x16xf32>
    %cst_6 = arith.constant dense<0xFF800000> : vector<8xf32>
    %13 = vector.multi_reduction <maximumf>, %12, %cst_6 [1] : vector<8x16xf32> to vector<8xf32>
    %14 = vector.shape_cast %13 : vector<8xf32> to vector<8x1xf32>
    %15 = tpu.iota {dimensions = array<i32: 1>} : vector<8x16xi32>
    %16 = vector.broadcast %14 : vector<8x1xf32> to vector<8x16xf32>
    %17 = arith.cmpf oeq, %12, %16 : vector<8x16xf32>
    %c16_i32 = arith.constant 16 : i32
    %18 = vector.broadcast %c16_i32 : i32 to vector<8x16xi32>
    %19 = arith.select %17, %15, %18 : vector<8x16xi1>, vector<8x16xi32>
    %cst_7 = arith.constant dense<2147483647> : vector<8xi32>
    %20 = vector.multi_reduction <minsi>, %19, %cst_7 [1] : vector<8x16xi32> to vector<8xi32>
    %21 = vector.shape_cast %20 : vector<8xi32> to vector<8x1xi32>
    %c0_8 = arith.constant 0 : index
    %c0_9 = arith.constant 0 : index
    %22 = vector.load %arg3[%c0_8, %c0_9] : memref<8x1xi32, #tpu.memory_space<vmem>>, vector<8x1xi32>
    tpu.vector_store %arg3[%c0_8, %c0_9], %21 {strides = array<i32>} : memref<8x1xi32, #tpu.memory_space<vmem>>, vector<8x1xi32>,
    return
  }
  func.func @transform_0(%arg0: i32) -> (i32, i32) {
    %c0_i32 = arith.constant 0 : i32
    %c0_i32_0 = arith.constant 0 : i32
    return %arg0, %c0_i32 : i32, i32
  }
  func.func @transform_1(%arg0: i32) -> (i32, i32) {
    %c0_i32 = arith.constant 0 : i32
    %c0_i32_0 = arith.constant 0 : i32
    return %arg0, %c0_i32 : i32, i32
  }
  func.func @transform_2(%arg0: i32) -> (i32, i32) {
    %c0_i32 = arith.constant 0 : i32
    %c0_i32_0 = arith.constant 0 : i32
    return %arg0, %c0_i32 : i32, i32
  }
}

</mosaic_0001>

<llo_original>
// kernel: tpu_custom_call.1
$region0: #{tpu_custom_call.1}
  #allocation0 [shape = 'u32[]', space=smem, size = 0x4, offset = 0x4, fixed_abs, tag = 'smem constant byte address 0x4 - core index']
  #allocation1 [shape = 'u32[144,128]{1,0:T(1,128)}', space=vmem, size = 0x12000, scoped, tag = 'internal scratch']
  %s0 = inlined_call_operand.hbm [shape: f32[8,16], index: 0, kind: input, shape index: {}]
  %s1 = inlined_call_operand.hbm [shape: f32[8,16], index: 1, kind: input, shape index: {}]
  %s2 = inlined_call_operand.vmem [shape: s32[8,1], index: 2, kind: output, shape index: {}]
  %s3 = sld [smem:[#allocation0]]
  $region26: #{tpu_custom_call.1} parent=0
    _
  %s5 = ssub.s32 1, %s3
  %s6 = scalar_select 0, %s5, %s3
  $region1: #{tpu_custom_call.1} parent=0
    #allocation2 [shape = 'u8[4096]{0}', space=vmem, size = 0x1000, scoped, tag = 'input window, operand 0, single buffered']
    #allocation3 [shape = 's32[1]{0}', space=sflag, size = 0x4, scoped, tag = 'scoped memory for tpu_custom_call.1']
    #allocation4 [shape = 'u8[4096]{0}', space=vmem, size = 0x1000, scoped, tag = 'input window, operand 1, single buffered']
    #allocation5 [shape = 's32[1]{0}', space=sflag, size = 0x4, scoped, tag = 'scoped memory for tpu_custom_call.1']
    %7 = vsyncpa [#allocation3], 0
    %8 = vsyncpa [#allocation5], 0
    // Predicated region
    $region2: #{tpu_custom_call.1} parent=1 // pred_check
      _
    $region3: #{tpu_custom_call.1} parent=1 // pred_check_branch
      %10 = sbr.rel (0) target = $region5
    $region4: #{tpu_custom_call.1} parent=1 // pred_region
      %s12 = ssub.s32 128, 128
      %13 = vsyncadd [#allocation3], %s12
      %s15 = sshll.u32 [#allocation2], 4
      %s16 = int_to_ptr.vmem [resolvable:$true] %s15
      %18 = dma.hbm_to_vmem [thread:$0]  %s0, 128, %s16, [#allocation3]
    $region5: #{tpu_custom_call.1} parent=1 // pred_fallthru
      _
    // Predicated region
    $region6: #{tpu_custom_call.1} parent=1 // pred_check
      _
    $region7: #{tpu_custom_call.1} parent=1 // pred_check_branch
      %20 = sbr.rel (0) target = $region9
    $region8: #{tpu_custom_call.1} parent=1 // pred_region
      %s22 = ssub.s32 128, 128
      %23 = vsyncadd [#allocation5], %s22
      %s25 = sshll.u32 [#allocation4], 4
      %s26 = int_to_ptr.vmem [resolvable:$true] %s25
      %28 = dma.hbm_to_vmem [thread:$0]  %s1, 128, %s26, [#allocation5]
    $region9: #{tpu_custom_call.1} parent=1 // pred_fallthru
      _
    // Predicated region
    $region10: #{tpu_custom_call.1} parent=1 // pred_check
      _
    $region11: #{tpu_custom_call.1} parent=1 // pred_check_branch
      %30 = sbr.rel (0) target = $region13
    $region12: #{tpu_custom_call.1} parent=1 // pred_region
      %31 = dma.done [#allocation3], 128
    $region13: #{tpu_custom_call.1} parent=1 // pred_fallthru
      _
    // Predicated region
    $region14: #{tpu_custom_call.1} parent=1 // pred_check
      _
    $region15: #{tpu_custom_call.1} parent=1 // pred_check_branch
      %33 = sbr.rel (0) target = $region17
    $region16: #{tpu_custom_call.1} parent=1 // pred_region
      %34 = dma.done [#allocation5], 128
    $region17: #{tpu_custom_call.1} parent=1 // pred_fallthru
      _
    %v35 = vld [vmem:[#allocation2] sm:$0xff]
    %v36 = vld [vmem:[#allocation4] sm:$0xff]
    %v37 = vmax.f32 %v36, 1e-12
    %v38 = vlog2.pop %v37
    %v39 = vmul.f32 %v38, 0.6931472
    %v40 = vsub.f32 0.0, %v39
    %v41 = vlog2.pop %v40
    %v42 = vmul.f32 %v41, 0.6931472
    %v43 = vsub.f32 0.0, %v42
    %v44 = vadd.f32 %v35, %v43
    %vm45 = vcmask 130048
    %v46 = vsel %vm45, %v44, -inf
    %47 = vmax.xlane.f32.xlu0 %v46
    %v48 = vpop.xlane.xlu0 %47
    %v49 = vlaneseq
    %v50 = vand.u32 %v49, 127
    %vm51 = vcmp.eq.f32.partialorder %v44, %v48
    %v52 = vsel %vm51, %v50, 16
    %v53 = vsel %vm45, %v52, 2147483647
    %v54 = vand.u32 %v53, 65535
    %v55 = vshra.s32 %v53, 16
    %v56 = vcvt.s32.f32 %v54
    %v57 = vcvt.s32.f32 %v55
    %58 = vmin.xlane.f32.xlu0 %v57
    %v59 = vpop.xlane.xlu0 %58
    %vm60 = vcmp.eq.f32.partialorder %v57, %v59
    %v61 = vsel %vm60, %v56, inf
    %62 = vmin.xlane.f32.xlu0 %v61
    %v63 = vpop.xlane.xlu0 %62
    %v64 = vcvt.f32.s32 %v63
    %v65 = vcvt.f32.s32 %v59
    %v66 = vshll.u32 %v65, 16
    %v67 = vadd.s32 %v66, %v64
    %vm68 = vcmask 7168
    %69 = vst.msk [vmem:[%s2] sm:$0xff] %vm68, %v67
    // Predicated region
    $region18: #{tpu_custom_call.1} parent=1 // pred_check
      _
    $region19: #{tpu_custom_call.1} parent=1 // pred_check_branch
      %71 = sbr.rel (0) target = $region21
    $region20: #{tpu_custom_call.1} parent=1 // pred_region
      _
    $region21: #{tpu_custom_call.1} parent=1 // pred_fallthru
      _
    // Predicated region
    $region22: #{tpu_custom_call.1} parent=1 // pred_check
      _
    $region23: #{tpu_custom_call.1} parent=1 // pred_check_branch
      %73 = sbr.rel (0) target = $region25
    $region24: #{tpu_custom_call.1} parent=1 // pred_region
      _
    $region25: #{tpu_custom_call.1} parent=1 // pred_fallthru
      _
    %74 = vsyncpa [#allocation3], 1
    %75 = vsyncpa [#allocation5], 1

</llo_original>
